<compile_context>
chip_gen: v7x
topology: tpu7x:2x2x1
jax: 0.10.0
libtpu: 0.0.40
codegen_flags: <defaults>
</compile_context>

<pallas_src>
import jax
import jax.numpy as jnp
from jax.experimental import pallas as pl
from jax.experimental.pallas import tpu as pltpu


def _vmem_capacity_bytes():
    """Physical VMEM per TensorCore, with a conservative fallback (v7x = 64 MiB)."""
    try:
        return int(pltpu.get_tpu_info().vmem_capacity_bytes)
    except Exception:
        return 64 * 1024 * 1024


def _cls_concat_flat_kernel(cls_ref, x_ref, o_ref):
    # cls_ref: (1, d)            cls token (d is a multiple of 128 on this path)
    # x_ref:   (bt, n*d)         batch tile of the input, (seq, dim) flattened
    # o_ref:   (bt, (n+1)*d)     each output row is [cls | x_row]
    bt = x_ref.shape[0]
    d = cls_ref.shape[-1]
    # Both column offsets (0 and d) are vreg-aligned -> unmasked lane-dense stores.
    o_ref[:, :d] = jnp.broadcast_to(cls_ref[...], (bt, d))
    o_ref[:, d:] = x_ref[...]


def _cls_concat_3d_kernel(cls_ref, x_ref, o_ref):
    # cls_ref: (1, 1, td)
    # x_ref:   (bt, n, td)
    # o_ref:   (bt, n+1, td)
    bt, _, td = x_ref.shape
    o_ref[:, 0:1, :] = jnp.broadcast_to(cls_ref[...], (bt, 1, td))
    o_ref[:, 1:, :] = x_ref[...]


def clstoken_add(x, cls_token):
    """x: (b, n, d); cls_token: (1, 1, d). Returns concat(cls broadcast to b, x) along seq -> (b, n+1, d)."""
    b, n, d = x.shape
    assert cls_token.shape == (1, 1, d), cls_token.shape
    cls_token = cls_token.astype(x.dtype)
    itemsize = jnp.dtype(x.dtype).itemsize

    bytes_accessed = (b * n * d + b * (n + 1) * d + d) * itemsize
    cost = pl.CostEstimate(flops=0, transcendentals=0,
                           bytes_accessed=int(bytes_accessed))

    vmem_cap = _vmem_capacity_bytes()
    # Per-grid-step tile budget (x tile + out tile); Pallas double-buffers, so
    # keep ~4x headroom against the physical capacity.
    tile_budget = min(vmem_cap // 4, 16 * 1024 * 1024)

    # Bytes of (x row + out row) for one batch element, feature dim untiled.
    row_bytes = (2 * n + 1) * d * itemsize

    # ---------------- Path A: flattened, lane-aligned (d % 128 == 0) ----------------
    use_flat = (d % 128 == 0)
    bt = b
    if use_flat:
        bt_cap = tile_budget // max(row_bytes, 1)
        if bt_cap >= b:
            bt = b
            # Enough VMEM for everything at once: still split large batches into
            # a few blocks so in/out DMAs pipeline and v7x megacore can share.
            if b >= 16:
                bt = max(8, ((b // 4) // 8) * 8)
        elif bt_cap >= 8:
            bt = (bt_cap // 8) * 8
        else:
            # A single batch row blows the flat-path tiling rules; fall back to
            # the 3-D path which can split the feature dim.
            use_flat = False

    if use_flat:
        grid_b = pl.cdiv(b, bt)  # partial last block handled by Pallas masking
        x2 = x.reshape(b, n * d)
        cls2 = cls_token.reshape(1, d)
        step_bytes = bt * row_bytes + d * itemsize
        vmem_limit = int(min(max(3 * step_bytes, 16 * 1024 * 1024),
                             vmem_cap - (2 << 20)))
        out2 = pl.pallas_call(
            _cls_concat_flat_kernel,
            out_shape=jax.ShapeDtypeStruct((b, (n + 1) * d), x.dtype),
            grid_spec=pltpu.PrefetchScalarGridSpec(
                num_scalar_prefetch=0,
                grid=(grid_b,),
                in_specs=[
                    pl.BlockSpec((1, d), lambda i: (0, 0)),
                    pl.BlockSpec((bt, n * d), lambda i: (i, 0)),
                ],
                out_specs=pl.BlockSpec((bt, (n + 1) * d), lambda i: (i, 0)),
            ),
            compiler_params=pltpu.CompilerParams(
                dimension_semantics=("parallel",),
                vmem_limit_bytes=vmem_limit,
            ),
            cost_estimate=cost,
        )(cls2, x2)
        return out2.reshape(b, n + 1, d)

    # ---------------- Path B: 3-D fallback (d not 128-aligned, or giant rows) ----------------
    # Keep the full feature dim per block unless a single batch row exceeds the
    # budget (review: never split d just because it is "large").
    td = d
    if d % 128 == 0 and (2 * n + 2) * d * itemsize > tile_budget:
        for t in (2048, 1024, 512, 256, 128):
            if d % t == 0 and (2 * n + 2) * t * itemsize <= tile_budget:
                td = t
                break
        else:
            td = 128 if d % 128 == 0 else d
    # TODO(synk): if one (n, td) row still exceeds the scoped-VMEM limit the seq
    # axis would need tiling (element-offset index maps for the +1 row shift);
    # not needed for ViT-sized inputs.

    per_batch_bytes = (2 * n + 2) * td * itemsize
    bt3 = int(max(1, min(b, tile_budget // max(per_batch_bytes, 1))))
    grid = (pl.cdiv(b, bt3), d // td)
    step_bytes = bt3 * per_batch_bytes + td * itemsize
    vmem_limit = int(min(max(3 * step_bytes, 16 * 1024 * 1024),
                         vmem_cap - (2 << 20)))
    return pl.pallas_call(
        _cls_concat_3d_kernel,
        out_shape=jax.ShapeDtypeStruct((b, n + 1, d), x.dtype),
        grid_spec=pltpu.PrefetchScalarGridSpec(
            num_scalar_prefetch=0,
            grid=grid,
            in_specs=[
                pl.BlockSpec((1, 1, td), lambda i, k: (0, 0, k)),
                pl.BlockSpec((bt3, n, td), lambda i, k: (i, 0, k)),
            ],
            out_specs=pl.BlockSpec((bt3, n + 1, td), lambda i, k: (i, 0, k)),
        ),
        compiler_params=pltpu.CompilerParams(
            dimension_semantics=("parallel", "parallel"),
            vmem_limit_bytes=vmem_limit,
        ),
        cost_estimate=cost,
    )(cls_token, x)


if __name__ == "__main__":
    key = jax.random.PRNGKey(0)

    # Small shapes consistent with the module: batch=2, seq(n)=8, dim=32
    # (exercises the 3-D fallback path, d not a multiple of 128).
    B, N, D = 2, 8, 32
    kx, kc, kx2, kc2 = jax.random.split(key, 4)
    x = jax.random.normal(kx, (B, N, D), dtype=jnp.float32)
    cls_token = jax.random.normal(kc, (1, 1, D), dtype=jnp.float32)  # matches torch.randn(1, 1, dim)
    ref = jnp.concatenate([jnp.broadcast_to(cls_token, (B, 1, D)), x], axis=1)
    out = jax.block_until_ready(clstoken_add(x, cls_token))
    assert out.shape == (B, N + 1, D)
    assert jnp.allclose(out, ref, atol=1e-6), "3-D path mismatch vs reference"

    # Also exercise the lane-aligned flattened path (d % 128 == 0) at small size.
    D2 = 128
    x2 = jax.random.normal(kx2, (B, N, D2), dtype=jnp.float32)
    cls2 = jax.random.normal(kc2, (1, 1, D2), dtype=jnp.float32)
    ref2 = jnp.concatenate([jnp.broadcast_to(cls2, (B, 1, D2)), x2], axis=1)
    out2 = jax.block_until_ready(clstoken_add(x2, cls2))
    assert out2.shape == (B, N + 1, D2)
    assert jnp.allclose(out2, ref2, atol=1e-6), "flat path mismatch vs reference"

    print("KERNEL_OK")
</pallas_src>

<mosaic_0001>
module attributes {stable_mosaic.version = 11 : i64} {
  func.func @_cls_concat_3d_kernel(%arg0: i32, %arg1: i32, %arg2: memref<1x1x32xf32, #tpu.memory_space<vmem>>, %arg3: memref<2x8x32xf32, #tpu.memory_space<vmem>>, %arg4: memref<2x9x32xf32, #tpu.memory_space<vmem>>) attributes {dimension_semantics = [#tpu.dimension_semantics<parallel>, #tpu.dimension_semantics<parallel>], iteration_bounds = array<i64: 1, 1>, scalar_prefetch = 0 : i64, scratch_operands = 0 : i64, tpu.core_type = #tpu.core_type<tc>, window_params = [{transform_indices = @transform_0, window_bounds = array<i64: 1, 1, 32>}, {transform_indices = @transform_1, window_bounds = array<i64: 2, 8, 32>}, {transform_indices = @transform_2, window_bounds = array<i64: 2, 9, 32>}]} {
    %c0 = arith.constant 0 : index
    %c0_0 = arith.constant 0 : index
    %c0_1 = arith.constant 0 : index
    %0 = vector.load %arg2[%c0, %c0_0, %c0_1] : memref<1x1x32xf32, #tpu.memory_space<vmem>>, vector<1x1x32xf32>
    %1 = vector.shape_cast %0 : vector<1x1x32xf32> to vector<1x1x32xf32>
    %2 = vector.broadcast %1 : vector<1x1x32xf32> to vector<2x1x32xf32>
    %c0_2 = arith.constant 0 : index
    %c0_3 = arith.constant 0 : index
    %c0_4 = arith.constant 0 : index
    %3 = vector.load %arg4[%c0_2, %c0_3, %c0_4] : memref<2x9x32xf32, #tpu.memory_space<vmem>>, vector<2x1x32xf32>
    tpu.vector_store %arg4[%c0_2, %c0_3, %c0_4], %2 {strides = array<i32>} : memref<2x9x32xf32, #tpu.memory_space<vmem>>, vector<2x1x32xf32>,
    %c0_5 = arith.constant 0 : index
    %c0_6 = arith.constant 0 : index
    %c0_7 = arith.constant 0 : index
    %4 = vector.load %arg3[%c0_5, %c0_6, %c0_7] : memref<2x8x32xf32, #tpu.memory_space<vmem>>, vector<2x8x32xf32>
    %c0_8 = arith.constant 0 : index
    %c1 = arith.constant 1 : index
    %c0_9 = arith.constant 0 : index
    %5 = vector.load %arg4[%c0_8, %c1, %c0_9] : memref<2x9x32xf32, #tpu.memory_space<vmem>>, vector<2x8x32xf32>
    tpu.vector_store %arg4[%c0_8, %c1, %c0_9], %4 {strides = array<i32>} : memref<2x9x32xf32, #tpu.memory_space<vmem>>, vector<2x8x32xf32>,
    return
  }
  func.func @transform_0(%arg0: i32, %arg1: i32) -> (i32, i32, i32) {
    %c0_i32 = arith.constant 0 : i32
    %c0_i32_0 = arith.constant 0 : i32
    %c0_i32_1 = arith.constant 0 : i32
    return %c0_i32, %c0_i32_0, %arg1 : i32, i32, i32
  }
  func.func @transform_1(%arg0: i32, %arg1: i32) -> (i32, i32, i32) {
    %c0_i32 = arith.constant 0 : i32
    %c0_i32_0 = arith.constant 0 : i32
    return %arg0, %c0_i32, %arg1 : i32, i32, i32
  }
  func.func @transform_2(%arg0: i32, %arg1: i32) -> (i32, i32, i32) {
    %c0_i32 = arith.constant 0 : i32
    %c0_i32_0 = arith.constant 0 : i32
    return %arg0, %c0_i32, %arg1 : i32, i32, i32
  }
}

</mosaic_0001>

<llo_original>
// kernel: tpu_custom_call.1
$region0: #{tpu_custom_call.1}
  #allocation0 [shape = 'u32[]', space=smem, size = 0x4, offset = 0x4, fixed_abs, tag = 'smem constant byte address 0x4 - core index']
  #allocation1 [shape = 'u32[144,128]{1,0:T(1,128)}', space=vmem, size = 0x12000, scoped, tag = 'internal scratch']
  %s0 = inlined_call_operand.hbm [shape: f32[1,1,32], index: 0, kind: input, shape index: {}]
  %s1 = inlined_call_operand.hbm [shape: f32[2,8,32], index: 1, kind: input, shape index: {}]
  %s2 = inlined_call_operand.vmem [shape: f32[2,9,32], index: 2, kind: output, shape index: {}]
  %s3 = sld [smem:[#allocation0]]
  $region26: #{tpu_custom_call.1} parent=0
    _
  %s5 = ssub.s32 1, %s3
  %s6 = scalar_select 0, %s5, %s3
  $region1: #{tpu_custom_call.1} parent=0
    #allocation2 [shape = 'u8[512]{0}', space=vmem, size = 0x400, scoped, tag = 'input window, operand 0, single buffered']
    #allocation3 [shape = 's32[1]{0}', space=sflag, size = 0x4, scoped, tag = 'scoped memory for tpu_custom_call.1']
    #allocation4 [shape = 'u8[8192]{0}', space=vmem, size = 0x2000, scoped, tag = 'input window, operand 1, single buffered']
    #allocation5 [shape = 's32[1]{0}', space=sflag, size = 0x4, scoped, tag = 'scoped memory for tpu_custom_call.1']
    %7 = vsyncpa [#allocation3], 0
    %8 = vsyncpa [#allocation5], 0
    // Predicated region
    $region2: #{tpu_custom_call.1} parent=1 // pred_check
      _
    $region3: #{tpu_custom_call.1} parent=1 // pred_check_branch
      %10 = sbr.rel (0) target = $region5
    $region4: #{tpu_custom_call.1} parent=1 // pred_region
      %s12 = ssub.s32 16, 16
      %13 = vsyncadd [#allocation3], %s12
      %s15 = sshll.u32 [#allocation2], 4
      %s16 = int_to_ptr.vmem [resolvable:$true] %s15
      %18 = dma.hbm_to_vmem [thread:$0]  %s0, 16, %s16, [#allocation3]
    $region5: #{tpu_custom_call.1} parent=1 // pred_fallthru
      _
    // Predicated region
    $region6: #{tpu_custom_call.1} parent=1 // pred_check
      _
    $region7: #{tpu_custom_call.1} parent=1 // pred_check_branch
      %20 = sbr.rel (0) target = $region9
    $region8: #{tpu_custom_call.1} parent=1 // pred_region
      %s22 = ssub.s32 256, 256
      %23 = vsyncadd [#allocation5], %s22
      %s24 = sshll.u32 [#allocation4], 4
      %s25 = int_to_ptr.vmem [resolvable:$true] %s24
      %30 = dma.hbm_to_vmem [thread:$0]  %s1, 256, %s25, [#allocation5], 128, 128, 8
    $region9: #{tpu_custom_call.1} parent=1 // pred_fallthru
      _
    // Predicated region
    $region10: #{tpu_custom_call.1} parent=1 // pred_check
      _
    $region11: #{tpu_custom_call.1} parent=1 // pred_check_branch
      %32 = sbr.rel (0) target = $region13
    $region12: #{tpu_custom_call.1} parent=1 // pred_region
      %33 = dma.done [#allocation3], 16
    $region13: #{tpu_custom_call.1} parent=1 // pred_fallthru
      _
    // Predicated region
    $region14: #{tpu_custom_call.1} parent=1 // pred_check
      _
    $region15: #{tpu_custom_call.1} parent=1 // pred_check_branch
      %35 = sbr.rel (0) target = $region17
    $region16: #{tpu_custom_call.1} parent=1 // pred_region
      %36 = dma.done [#allocation5], 256
    $region17: #{tpu_custom_call.1} parent=1 // pred_fallthru
      _
    %v37 = vld [vmem:[#allocation2] sm:$0x1]
    %vm38 = vcmask 253952
    %39 = vst.msk [vmem:[%s2] sm:$0x1] %vm38, %v37
    %40 = vst.msk [vmem:[%s2 + $0x10] sm:$0x1] %vm38, %v37
    %v41 = vld [vmem:[#allocation4] sm:$0xff]
    %v42 = vld [vmem:[#allocation4 + $0x8] sm:$0xff]
    %vm43 = vcmask 261120
    %44 = vst.msk [vmem:[%s2 + $0x1] sm:$0xff] %vm43, %v41
    %45 = vst.msk [vmem:[%s2 + $0x11] sm:$0xff] %vm43, %v42
    // Predicated region
    $region18: #{tpu_custom_call.1} parent=1 // pred_check
      _
    $region19: #{tpu_custom_call.1} parent=1 // pred_check_branch
      %47 = sbr.rel (0) target = $region21
    $region20: #{tpu_custom_call.1} parent=1 // pred_region
      _
    $region21: #{tpu_custom_call.1} parent=1 // pred_fallthru
      _
    // Predicated region
    $region22: #{tpu_custom_call.1} parent=1 // pred_check
      _
    $region23: #{tpu_custom_call.1} parent=1 // pred_check_branch
      %49 = sbr.rel (0) target = $region25
    $region24: #{tpu_custom_call.1} parent=1 // pred_region
      _
    $region25: #{tpu_custom_call.1} parent=1 // pred_fallthru
      _
    %50 = vsyncpa [#allocation3], 1
    %51 = vsyncpa [#allocation5], 1

</llo_original>
